<compile_context>
chip_gen: v7x
topology: tpu7x:2x2x1
jax: 0.10.0
libtpu: 0.0.40
codegen_flags: <defaults>
</compile_context>

<pallas_src>
import functools

import jax
import jax.numpy as jnp
from jax.experimental import pallas as pl
from jax.experimental.pallas import tpu as pltpu

_MIB = 1024 * 1024


# --------------------------------- kernels ----------------------------------

def _gate_kernel_resident(x1_ref, x2_ref, wt_ref, ut_ref, o_ref, *, mxu_dtype):
    """Weights fully resident in VMEM (no column tiling)."""
    x1 = x1_ref[...]
    x2 = x2_ref[...]
    pre = (jnp.dot(x1.astype(mxu_dtype), wt_ref[...],
                   preferred_element_type=jnp.float32)
           + jnp.dot(x2.astype(mxu_dtype), ut_ref[...],
                     preferred_element_type=jnp.float32))
    g = jax.nn.sigmoid(pre)
    x1f = x1.astype(jnp.float32)
    x2f = x2.astype(jnp.float32)
    # v = x2 + g*(x1 - x2)  ==  g*x1 + (1-g)*x2  (one fewer multiply / temp)
    o_ref[...] = (x2f + g * (x1f - x2f)).astype(o_ref.dtype)


def _gate_kernel_ntiled(x1_ref, x2_ref, wt_ref, ut_ref, o_ref, *, tn, mxu_dtype):
    """Column-tiled weights: (H, tn) slabs.

    x1_ref/x2_ref are the full-width (tm, H) row tiles (matmul LHS, contraction
    over all of H).  The blend operands are sliced in-kernel from those
    resident tiles (tn is a 128-multiple divisor of H, so this is a tile-
    aligned VMEM view, no extra HBM read).
    """
    j = pl.program_id(1)
    off = pl.multiple_of(j * tn, 128)
    x1 = x1_ref[...]
    x2 = x2_ref[...]
    pre = (jnp.dot(x1.astype(mxu_dtype), wt_ref[...],
                   preferred_element_type=jnp.float32)
           + jnp.dot(x2.astype(mxu_dtype), ut_ref[...],
                     preferred_element_type=jnp.float32))
    g = jax.nn.sigmoid(pre)
    x1c = x1_ref[:, pl.ds(off, tn)].astype(jnp.float32)
    x2c = x2_ref[:, pl.ds(off, tn)].astype(jnp.float32)
    o_ref[...] = (x2c + g * (x1c - x2c)).astype(o_ref.dtype)


# --------------------------------- wrapper -----------------------------------

def _vmem_capacity_bytes():
    """Generation-aware VMEM capacity; conservative fallback is v7x's 64 MiB."""
    try:
        return int(pltpu.get_tpu_info().vmem_capacity_bytes)
    except Exception:
        return 64 * _MIB


def prepare_gate_params(W_d, U_d, *, use_bf16_matmul=True):
    """Hoist the weight transpose (and optional bf16 cast) out of the hot path.

    PyTorch nn.Linear stores (out_features, in_features); the kernel consumes
    (in, out) so `x @ wt` == Linear(x).
    """
    wt, ut = W_d.T, U_d.T
    if use_bf16_matmul and wt.dtype == jnp.float32:
        wt = wt.astype(jnp.bfloat16)
        ut = ut.astype(jnp.bfloat16)
    return wt, ut


def gate_forward(input1, input2, wt, ut, *, tm=512, tn=512,
                 force_column_tiled=False):
    """input1/input2: (B, S, H).  wt/ut: pre-transposed weights (H_in, H_out)."""
    B, S, H = input1.shape
    M = B * S
    x1 = input1.reshape(M, H)
    x2 = input2.reshape(M, H)

    itm = jnp.dtype(input1.dtype).itemsize
    itw = jnp.dtype(wt.dtype).itemsize
    gran = max(8, 32 // itm)          # sublane granule: f32=8, bf16=16, int8/fp8=32

    vmem_cap = _vmem_capacity_bytes()
    shrink_target = int(0.6 * vmem_cap)

    # ---- row tile (M axis) ---------------------------------------------------
    tm = min(tm, M)
    if tm < M:
        tm = max((tm // gran) * gran, gran)

    # ---- resident vs column-tiled: weight bytes vs per-generation VMEM budget
    resident_wbytes = 2 * H * H * itw              # single-buffered (constant index)
    resident = (resident_wbytes <= vmem_cap // 3) and not force_column_tiled
    if not resident and H % 128 != 0:
        # No 128-aligned column tiling possible; fall back to resident weights.
        # TODO(synk): very large non-128-multiple H could still exceed VMEM here.
        resident = True

    if resident:
        tn = H
    else:
        tn = min(tn, H)
        tn = max((tn // 128) * 128, 128)
        while H % tn != 0:                         # largest 128-multiple divisor of H
            tn -= 128

    # ---- VMEM estimate & auto-shrink (tn first, then tm) ---------------------
    def _vmem_estimate(tm_, tn_):
        est = 2 * 2 * tm_ * H * itm                # x1/x2 row tiles, double-buffered
        if tn_ == H:
            est += 2 * 1 * H * H * itw             # resident weights, single-buffered
        else:
            est += 2 * 2 * H * tn_ * itw           # streamed weight slabs
        est += 2 * tm_ * tn_ * itm                 # output tile, double-buffered
        est += 4 * tm_ * tn_ * 4                   # f32 epilogue temporaries (rough)
        return est

    while _vmem_estimate(tm, tn) > shrink_target:
        if tn < H and tn > 128:                    # shrink weight-slab width first
            tn -= 128
            while tn > 128 and H % tn != 0:
                tn -= 128
        elif tm > gran:                            # then the row tile
            tm = max(((tm // 2) // gran) * gran, gran)
        else:
            break

    nn = H // tn
    nm = pl.cdiv(M, tm)

    # v7x has two TensorCores: make sure there are >= 2 parallel grid steps.
    if nm == 1 and nn == 1 and M >= 2 * gran:
        tm = max((((M + 1) // 2 + gran - 1) // gran) * gran, gran)
        nm = pl.cdiv(M, tm)

    est = _vmem_estimate(tm, tn)
    vmem_limit = int(min(max(2 * est, 32 * _MIB), vmem_cap - 8 * _MIB))
    vmem_limit = max(vmem_limit, 16 * _MIB)

    out_shape = jax.ShapeDtypeStruct((M, H), input1.dtype)
    cost = pl.CostEstimate(
        flops=4 * M * H * H,
        transcendentals=M * H,
        bytes_accessed=3 * M * H * itm + 2 * H * H * itw)

    mxu_dtype = wt.dtype

    if nn == 1:
        def _run_resident(single_buffer_weights):
            if single_buffer_weights:
                w_spec = pl.BlockSpec((H, H), lambda i: (0, 0),
                                      pipeline_mode=pl.Buffered(1))
                u_spec = pl.BlockSpec((H, H), lambda i: (0, 0),
                                      pipeline_mode=pl.Buffered(1))
            else:
                w_spec = pl.BlockSpec((H, H), lambda i: (0, 0))
                u_spec = pl.BlockSpec((H, H), lambda i: (0, 0))
            return pl.pallas_call(
                functools.partial(_gate_kernel_resident, mxu_dtype=mxu_dtype),
                out_shape=out_shape,
                grid_spec=pltpu.PrefetchScalarGridSpec(
                    num_scalar_prefetch=0,
                    grid=(nm,),
                    in_specs=[
                        pl.BlockSpec((tm, H), lambda i: (i, 0)),   # input1 rows
                        pl.BlockSpec((tm, H), lambda i: (i, 0)),   # input2 rows
                        w_spec,                                    # W_d^T (resident)
                        u_spec,                                    # U_d^T (resident)
                    ],
                    out_specs=pl.BlockSpec((tm, H), lambda i: (i, 0)),
                ),
                compiler_params=pltpu.CompilerParams(
                    dimension_semantics=("parallel",),
                    vmem_limit_bytes=vmem_limit),
                cost_estimate=cost,
            )(x1, x2, wt, ut)

        try:
            out = _run_resident(True)      # single-buffer the constant-index weights
        except Exception:
            out = _run_resident(False)     # fallback if Buffered(1) is unsupported
    else:
        # 2-D grid: rows outer, output columns inner.  Full-width activations
        # have a j-invariant index map so they are DMA'd once per row tile.
        out = pl.pallas_call(
            functools.partial(_gate_kernel_ntiled, tn=tn, mxu_dtype=mxu_dtype),
            out_shape=out_shape,
            grid_spec=pltpu.PrefetchScalarGridSpec(
                num_scalar_prefetch=0,
                grid=(nm, nn),
                in_specs=[
                    pl.BlockSpec((tm, H), lambda i, j: (i, 0)),    # x1 full row tile
                    pl.BlockSpec((tm, H), lambda i, j: (i, 0)),    # x2 full row tile
                    pl.BlockSpec((H, tn), lambda i, j: (0, j)),    # W_d^T column slab
                    pl.BlockSpec((H, tn), lambda i, j: (0, j)),    # U_d^T column slab
                ],
                out_specs=pl.BlockSpec((tm, tn), lambda i, j: (i, j)),
            ),
            compiler_params=pltpu.CompilerParams(
                dimension_semantics=("parallel", "parallel"),
                vmem_limit_bytes=vmem_limit),
            cost_estimate=cost,
        )(x1, x2, wt, ut)

    return out.reshape(B, S, H)


def gate_reference(input1, input2, W_d, U_d):
    g = jax.nn.sigmoid(input1 @ W_d.T + input2 @ U_d.T)
    return g * input1 + (1.0 - g) * input2


# ----------------------------------- test ------------------------------------

if __name__ == "__main__":
    key = jax.random.PRNGKey(0)

    def run_case(B, S, H, tn, use_bf16_matmul, force_column_tiled):
        ks = jax.random.split(jax.random.fold_in(key, H * 7 + tn), 4)
        input1 = jax.random.normal(ks[0], (B, S, H), dtype=jnp.float32)
        input2 = jax.random.normal(ks[1], (B, S, H), dtype=jnp.float32)
        # nn.Linear(hidden, hidden, bias=False): weight shape (out, in) = (H, H)
        bound = 1.0 / float(H) ** 0.5
        W_d = jax.random.uniform(ks[2], (H, H), jnp.float32, -bound, bound)
        U_d = jax.random.uniform(ks[3], (H, H), jnp.float32, -bound, bound)

        wt, ut = prepare_gate_params(W_d, U_d, use_bf16_matmul=use_bf16_matmul)
        out = gate_forward(input1, input2, wt, ut, tn=tn,
                           force_column_tiled=force_column_tiled)
        out = jax.block_until_ready(out)

        ref = gate_reference(input1, input2, W_d, U_d)
        assert out.shape == (B, S, H)
        tol = 3e-2 if use_bf16_matmul else 1e-4
        err = float(jnp.max(jnp.abs(out - ref)))
        assert err < tol, f"mismatch H={H} bf16={use_bf16_matmul} err={err}"

    # Resident path, exact f32 matmul (tight tolerance).
    run_case(B=2, S=8, H=32, tn=512, use_bf16_matmul=False, force_column_tiled=False)
    # Resident path with bf16 MXU operands (production default for f32 models).
    run_case(B=2, S=8, H=32, tn=512, use_bf16_matmul=True, force_column_tiled=False)
    # Column-tiled path (weights streamed as (H, tn) slabs), f32 exact.
    run_case(B=2, S=8, H=256, tn=128, use_bf16_matmul=False, force_column_tiled=True)
    # Column-tiled path with bf16 MXU operands.
    run_case(B=2, S=8, H=256, tn=128, use_bf16_matmul=True, force_column_tiled=True)

    print("KERNEL_OK")
</pallas_src>

<mosaic_0001>
module attributes {stable_mosaic.version = 11 : i64} {
  func.func @_gate_kernel_resident(%arg0: i32, %arg1: memref<8x32xf32, #tpu.memory_space<vmem>>, %arg2: memref<8x32xf32, #tpu.memory_space<vmem>>, %arg3: memref<32x32xf32, #tpu.memory_space<vmem>>, %arg4: memref<32x32xf32, #tpu.memory_space<vmem>>, %arg5: memref<8x32xf32, #tpu.memory_space<vmem>>) attributes {dimension_semantics = [#tpu.dimension_semantics<parallel>], iteration_bounds = array<i64: 2>, scalar_prefetch = 0 : i64, scratch_operands = 0 : i64, tpu.core_type = #tpu.core_type<tc>, window_params = [{transform_indices = @transform_0, window_bounds = array<i64: 8, 32>}, {transform_indices = @transform_1, window_bounds = array<i64: 8, 32>}, {pipeline_mode = #tpu.pipeline_mode<synchronous>, transform_indices = @transform_2, window_bounds = array<i64: 32, 32>}, {pipeline_mode = #tpu.pipeline_mode<synchronous>, transform_indices = @transform_3, window_bounds = array<i64: 32, 32>}, {transform_indices = @transform_4, window_bounds = array<i64: 8, 32>}]} {
    %c0 = arith.constant 0 : index
    %c0_0 = arith.constant 0 : index
    %0 = vector.load %arg1[%c0, %c0_0] : memref<8x32xf32, #tpu.memory_space<vmem>>, vector<8x32xf32>
    %c0_1 = arith.constant 0 : index
    %c0_2 = arith.constant 0 : index
    %1 = vector.load %arg2[%c0_1, %c0_2] : memref<8x32xf32, #tpu.memory_space<vmem>>, vector<8x32xf32>
    %c0_3 = arith.constant 0 : index
    %c0_4 = arith.constant 0 : index
    %2 = vector.load %arg3[%c0_3, %c0_4] : memref<32x32xf32, #tpu.memory_space<vmem>>, vector<32x32xf32>
    %cst = arith.constant dense<0.000000e+00> : vector<8x32xf32>
    %3 = tpu.matmul %0, %2, %cst {dimension_numbers = #tpu.dot_dimension_numbers<[1], [0], [0], [1], [0, 0, 1, 1], [], []>} : vector<8x32xf32>, vector<32x32xf32>, vector<8x32xf32> -> vector<8x32xf32>
    %c0_5 = arith.constant 0 : index
    %c0_6 = arith.constant 0 : index
    %4 = vector.load %arg4[%c0_5, %c0_6] : memref<32x32xf32, #tpu.memory_space<vmem>>, vector<32x32xf32>
    %cst_7 = arith.constant dense<0.000000e+00> : vector<8x32xf32>
    %5 = tpu.matmul %1, %4, %cst_7 {dimension_numbers = #tpu.dot_dimension_numbers<[1], [0], [0], [1], [0, 0, 1, 1], [], []>} : vector<8x32xf32>, vector<32x32xf32>, vector<8x32xf32> -> vector<8x32xf32>
    %6 = arith.addf %3, %5 : vector<8x32xf32>
    %7 = arith.negf %6 : vector<8x32xf32>
    %8 = math.exp %7 : vector<8x32xf32>
    %cst_8 = arith.constant 1.000000e+00 : f32
    %9 = vector.broadcast %cst_8 : f32 to vector<8x32xf32>
    %10 = arith.addf %9, %8 : vector<8x32xf32>
    %11 = arith.divf %9, %10 : vector<8x32xf32>
    %12 = arith.subf %0, %1 : vector<8x32xf32>
    %13 = arith.mulf %11, %12 : vector<8x32xf32>
    %14 = arith.addf %1, %13 : vector<8x32xf32>
    %c0_9 = arith.constant 0 : index
    %c0_10 = arith.constant 0 : index
    %15 = vector.load %arg5[%c0_9, %c0_10] : memref<8x32xf32, #tpu.memory_space<vmem>>, vector<8x32xf32>
    tpu.vector_store %arg5[%c0_9, %c0_10], %14 {strides = array<i32>} : memref<8x32xf32, #tpu.memory_space<vmem>>, vector<8x32xf32>,
    return
  }
  func.func @transform_0(%arg0: i32) -> (i32, i32) {
    %c0_i32 = arith.constant 0 : i32
    %c0_i32_0 = arith.constant 0 : i32
    return %arg0, %c0_i32 : i32, i32
  }
  func.func @transform_1(%arg0: i32) -> (i32, i32) {
    %c0_i32 = arith.constant 0 : i32
    %c0_i32_0 = arith.constant 0 : i32
    return %arg0, %c0_i32 : i32, i32
  }
  func.func @transform_2(%arg0: i32) -> (i32, i32) {
    %c0_i32 = arith.constant 0 : i32
    %c0_i32_0 = arith.constant 0 : i32
    %c0_i32_1 = arith.constant 0 : i32
    return %c0_i32, %c0_i32_0 : i32, i32
  }
  func.func @transform_3(%arg0: i32) -> (i32, i32) {
    %c0_i32 = arith.constant 0 : i32
    %c0_i32_0 = arith.constant 0 : i32
    %c0_i32_1 = arith.constant 0 : i32
    return %c0_i32, %c0_i32_0 : i32, i32
  }
  func.func @transform_4(%arg0: i32) -> (i32, i32) {
    %c0_i32 = arith.constant 0 : i32
    %c0_i32_0 = arith.constant 0 : i32
    return %arg0, %c0_i32 : i32, i32
  }
}

module attributes {stable_mosaic.version = 11 : i64} {
  func.func @_gate_kernel_resident(%arg0: i32, %arg1: memref<8x32xf32, #tpu.memory_space<vmem>>, %arg2: memref<8x32xf32, #tpu.memory_space<vmem>>, %arg3: memref<32x32xf32, #tpu.memory_space<vmem>>, %arg4: memref<32x32xf32, #tpu.memory_space<vmem>>, %arg5: memref<8x32xf32, #tpu.memory_space<vmem>>) attributes {dimension_semantics = [#tpu.dimension_semantics<parallel>], iteration_bounds = array<i64: 2>, scalar_prefetch = 0 : i64, scratch_operands = 0 : i64, tpu.core_type = #tpu.core_type<tc>, window_params = [{transform_indices = @transform_0, window_bounds = array<i64: 8, 32>}, {transform_indices = @transform_1, window_bounds = array<i64: 8, 32>}, {pipeline_mode = #tpu.pipeline_mode<synchronous>, transform_indices = @transform_2, window_bounds = array<i64: 32, 32>}, {pipeline_mode = #tpu.pipeline_mode<synchronous>, transform_indices = @transform_3, window_bounds = array<i64: 32, 32>}, {transform_indices = @transform_4, window_bounds = array<i64: 8, 32>}]} {
    %c0 = arith.constant 0 : index
    %c0_0 = arith.constant 0 : index
    %0 = vector.load %arg1[%c0, %c0_0] : memref<8x32xf32, #tpu.memory_space<vmem>>, vector<8x32xf32>
    %c0_1 = arith.constant 0 : index
    %c0_2 = arith.constant 0 : index
    %1 = vector.load %arg2[%c0_1, %c0_2] : memref<8x32xf32, #tpu.memory_space<vmem>>, vector<8x32xf32>
    %c0_3 = arith.constant 0 : index
    %c0_4 = arith.constant 0 : index
    %2 = vector.load %arg3[%c0_3, %c0_4] : memref<32x32xf32, #tpu.memory_space<vmem>>, vector<32x32xf32>
    %cst = arith.constant dense<0.000000e+00> : vector<8x32xf32>
    %3 = tpu.matmul %0, %2, %cst {dimension_numbers = #tpu.dot_dimension_numbers<[1], [0], [0], [1], [0, 0, 1, 1], [], []>} : vector<8x32xf32>, vector<32x32xf32>, vector<8x32xf32> -> vector<8x32xf32>
    %c0_5 = arith.constant 0 : index
    %c0_6 = arith.constant 0 : index
    %4 = vector.load %arg4[%c0_5, %c0_6] : memref<32x32xf32, #tpu.memory_space<vmem>>, vector<32x32xf32>
    %cst_7 = arith.constant dense<0.000000e+00> : vector<8x32xf32>
    %5 = tpu.matmul %1, %4, %cst_7 {dimension_numbers = #tpu.dot_dimension_numbers<[1], [0], [0], [1], [0, 0, 1, 1], [], []>} : vector<8x32xf32>, vector<32x32xf32>, vector<8x32xf32> -> vector<8x32xf32>
    %6 = arith.addf %3, %5 : vector<8x32xf32>
    %7 = arith.negf %6 : vector<8x32xf32>
    %8 = math.exp %7 : vector<8x32xf32>
    %cst_8 = arith.constant 1.000000e+00 : f32
    %9 = vector.broadcast %cst_8 : f32 to vector<8x32xf32>
    %10 = arith.addf %9, %8 : vector<8x32xf32>
    %11 = arith.divf %9, %10 : vector<8x32xf32>
    %12 = arith.subf %0, %1 : vector<8x32xf32>
    %13 = arith.mulf %11, %12 : vector<8x32xf32>
    %14 = arith.addf %1, %13 : vector<8x32xf32>
    %c0_9 = arith.constant 0 : index
    %c0_10 = arith.constant 0 : index
    %15 = vector.load %arg5[%c0_9, %c0_10] : memref<8x32xf32, #tpu.memory_space<vmem>>, vector<8x32xf32>
    tpu.vector_store %arg5[%c0_9, %c0_10], %14 {strides = array<i32>} : memref<8x32xf32, #tpu.memory_space<vmem>>, vector<8x32xf32>,
    return
  }
  func.func @transform_0(%arg0: i32) -> (i32, i32) {
    %c0_i32 = arith.constant 0 : i32
    %c0_i32_0 = arith.constant 0 : i32
    return %arg0, %c0_i32 : i32, i32
  }
  func.func @transform_1(%arg0: i32) -> (i32, i32) {
    %c0_i32 = arith.constant 0 : i32
    %c0_i32_0 = arith.constant 0 : i32
    return %arg0, %c0_i32 : i32, i32
  }
  func.func @transform_2(%arg0: i32) -> (i32, i32) {
    %c0_i32 = arith.constant 0 : i32
    %c0_i32_0 = arith.constant 0 : i32
    %c0_i32_1 = arith.constant 0 : i32
    return %c0_i32, %c0_i32_0 : i32, i32
  }
  func.func @transform_3(%arg0: i32) -> (i32, i32) {
    %c0_i32 = arith.constant 0 : i32
    %c0_i32_0 = arith.constant 0 : i32
    %c0_i32_1 = arith.constant 0 : i32
    return %c0_i32, %c0_i32_0 : i32, i32
  }
  func.func @transform_4(%arg0: i32) -> (i32, i32) {
    %c0_i32 = arith.constant 0 : i32
    %c0_i32_0 = arith.constant 0 : i32
    return %arg0, %c0_i32 : i32, i32
  }
}

</mosaic_0001>

<llo_original>
// kernel: tpu_custom_call.1
$region0: #{tpu_custom_call.1}
  #allocation0 [shape = 'u32[]', space=smem, size = 0x4, offset = 0x4, fixed_abs, tag = 'smem constant byte address 0x4 - core index']
  #allocation1 [shape = 'u32[144,128]{1,0:T(1,128)}', space=vmem, size = 0x12000, scoped, tag = 'internal scratch']
  %s0 = inlined_call_operand.hbm [shape: f32[16,32], index: 0, kind: input, shape index: {}]
  %s1 = inlined_call_operand.hbm [shape: f32[16,32], index: 1, kind: input, shape index: {}]
  %s2 = inlined_call_operand.hbm [shape: f32[32,32], index: 2, kind: input, shape index: {}]
  %s3 = inlined_call_operand.hbm [shape: f32[32,32], index: 3, kind: input, shape index: {}]
  %s4 = inlined_call_operand.hbm [shape: f32[16,32], index: 4, kind: output, shape index: {}]
  %s5 = sld [smem:[#allocation0]]
  $region65: #{tpu_custom_call.1} parent=0
    _
  %s7 = ssub.s32 1, %s5
  %s8 = scalar_select 0, %s7, %s5
  $region1: #{tpu_custom_call.1} parent=0
    #allocation2 [shape = 'u8[8192]{0}', space=vmem, size = 0x2000, scoped, tag = 'input window, operand 0']
    #allocation3 [shape = 's32[2]{0}', space=sflag, size = 0x8, scoped, tag = 'scoped memory for tpu_custom_call.1']
    #allocation4 [shape = 's32[2]{0}', space=sflag, size = 0x8, scoped, tag = 'scoped memory for tpu_custom_call.1']
    #allocation5 [shape = 'u8[8192]{0}', space=vmem, size = 0x2000, scoped, tag = 'input window, operand 1']
    #allocation6 [shape = 's32[2]{0}', space=sflag, size = 0x8, scoped, tag = 'scoped memory for tpu_custom_call.1']
    #allocation7 [shape = 'u8[16384]{0}', space=vmem, size = 0x4000, scoped, tag = 'input window, operand 2, single buffered']
    #allocation8 [shape = 'u8[16384]{0}', space=vmem, size = 0x4000, scoped, tag = 'input window, operand 3, single buffered']
    #allocation9 [shape = 's32[1]{0}', space=sflag, size = 0x4, scoped, tag = 'scoped memory for tpu_custom_call.1']
    #allocation10 [shape = 'u8[8192]{0}', space=vmem, size = 0x2000, scoped, tag = 'output window, operand 0']
    %9 = vsyncpa [#allocation3], 0
    %s10 = scalar_lea.sflag [#allocation3], 1
    %11 = vsyncpa %s10, 0
    %12 = vsyncpa [#allocation6], 0
    %s13 = scalar_lea.sflag [#allocation6], 1
    %14 = vsyncpa %s13, 0
    %15 = vsyncpa [#allocation9], 0
    %16 = vsyncpa [#allocation4], 0
    %s17 = scalar_lea.sflag [#allocation4], 1
    %18 = vsyncpa %s17, 0
    loop: start=0, step=1, limit=4
    $region2: #{tpu_custom_call.1} parent=1 // loop_pre_header
      _
    $region3: #{tpu_custom_call.1} parent=1 // loop_header
      %s20 = sphi 0, %s24
      %p21 = scmp.ge.s32.totalorder %s20, 4
      %s30 = sphi 0, %s32
      %s33 = sphi 0, %s30
      %s34 = sphi 0, %s33
      %s50 = sphi 0, %s34
      %s56 = sphi 0, %s58
      %s59 = sphi 0, %s56
      %s60 = sphi 0, %s59
      %s76 = sphi 0, %s60
      %s80 = sphi 0, %s80
      %s82 = sphi 0, %s80
      %s83 = sphi 0, %s82
      %s97 = sphi 0, %s83
      %s101 = sphi 0, %s101
      %s103 = sphi 0, %s101
      %s104 = sphi 0, %s103
      %s118 = sphi 0, %s104
      %s124 = sphi 0, %s126
      %s127 = sphi 0, %s124
      %s128 = sphi 0, %s127
      %s144 = sphi 0, %s128
    $region4: #{tpu_custom_call.1} parent=1 // loop_header_branch
      %23 = sbr.rel (%p21) target = $region8
    $region5: #{tpu_custom_call.1} parent=1 // loop_body
      %s25 = ssub.s32 %s20, 1
      %s26 = ssub.s32 %s20, 2
      %s27 = sadd.s32 %s20, 1
      %s28 = ssub.s32 %s20, %s27
      %p29 = scmp.eq.s32.totalorder %s28, 0
      %s31 = sadd.s32 %s30, 1
      %s32 = scalar_select %p29, %s30, %s31
      %p35 = pneg %p29
      %p36 = scmp.eq.s32.totalorder %s20, 1
      %p37 = por %p35, %p36
      %p38 = scmp.ne.s32.totalorder %s30, %s33
      %p39 = scmp.eq.s32.totalorder %s20, 0
      %p40 = por %p38, %p39
      %p41 = scmp.ne.s32.totalorder %s30, %s33
      %p42 = scmp.eq.s32.totalorder %s25, 1
      %p43 = por %p41, %p42
      %p44 = scmp.ne.s32.totalorder %s33, %s34
      %p45 = scmp.eq.s32.totalorder %s25, 0
      %p46 = por %p44, %p45
      %p47 = scmp.ne.s32.totalorder %s33, %s34
      %p48 = scmp.eq.s32.totalorder %s26, 1
      %p49 = por %p47, %p48
      %p51 = scmp.ne.s32.totalorder %s34, %s50
      %p52 = scmp.eq.s32.totalorder %s26, 0
      %p53 = por %p51, %p52
      %s54 = ssub.s32 %s20, %s27
      %p55 = scmp.eq.s32.totalorder %s54, 0
      %s57 = sadd.s32 %s56, 1
      %s58 = scalar_select %p55, %s56, %s57
      %p61 = pneg %p55
      %p62 = scmp.eq.s32.totalorder %s20, 1
      %p63 = por %p61, %p62
      %p64 = scmp.ne.s32.totalorder %s56, %s59
      %p65 = scmp.eq.s32.totalorder %s20, 0
      %p66 = por %p64, %p65
      %p67 = scmp.ne.s32.totalorder %s56, %s59
      %p68 = scmp.eq.s32.totalorder %s25, 1
      %p69 = por %p67, %p68
      %p70 = scmp.ne.s32.totalorder %s59, %s60
      %p71 = scmp.eq.s32.totalorder %s25, 0
      %p72 = por %p70, %p71
      %p73 = scmp.ne.s32.totalorder %s59, %s60
      %p74 = scmp.eq.s32.totalorder %s26, 1
      %p75 = por %p73, %p74
      %p77 = scmp.ne.s32.totalorder %s60, %s76
      %p78 = scmp.eq.s32.totalorder %s26, 0
      %p79 = por %p77, %p78
      %s81 = sadd.s32 %s80, 1
      %p84 = scmp.eq.s32.totalorder %s20, 1
      %p85 = scmp.ne.s32.totalorder %s80, %s82
      %p86 = scmp.eq.s32.totalorder %s20, 0
      %p87 = por %p85, %p86
      %p88 = scmp.ne.s32.totalorder %s80, %s82
      %p89 = scmp.eq.s32.totalorder %s25, 1
      %p90 = por %p88, %p89
      %p91 = scmp.ne.s32.totalorder %s82, %s83
      %p92 = scmp.eq.s32.totalorder %s25, 0
      %p93 = por %p91, %p92
      %p94 = scmp.ne.s32.totalorder %s82, %s83
      %p95 = scmp.eq.s32.totalorder %s26, 1
      %p96 = por %p94, %p95
      %p98 = scmp.ne.s32.totalorder %s83, %s97
      %p99 = scmp.eq.s32.totalorder %s26, 0
      %p100 = por %p98, %p99
      %s102 = sadd.s32 %s101, 1
      %p105 = scmp.eq.s32.totalorder %s20, 1
      %p106 = scmp.ne.s32.totalorder %s101, %s103
      %p107 = scmp.eq.s32.totalorder %s20, 0
      %p108 = por %p106, %p107
      %p109 = scmp.ne.s32.totalorder %s101, %s103
      %p110 = scmp.eq.s32.totalorder %s25, 1
      %p111 = por %p109, %p110
      %p112 = scmp.ne.s32.totalorder %s103, %s104
      %p113 = scmp.eq.s32.totalorder %s25, 0
      %p114 = por %p112, %p113
      %p115 = scmp.ne.s32.totalorder %s103, %s104
      %p116 = scmp.eq.s32.totalorder %s26, 1
      %p117 = por %p115, %p116
      %p119 = scmp.ne.s32.totalorder %s104, %s118
      %p120 = scmp.eq.s32.totalorder %s26, 0
      %p121 = por %p119, %p120
      %s122 = ssub.s32 %s20, %s27
      %p123 = scmp.eq.s32.totalorder %s122, 0
      %s125 = sadd.s32 %s124, 1
      %s126 = scalar_select %p123, %s124, %s125
      %p129 = pneg %p123
      %p130 = scmp.eq.s32.totalorder %s20, 1
      %p131 = por %p129, %p130
      %p132 = scmp.ne.s32.totalorder %s124, %s127
      %p133 = scmp.eq.s32.totalorder %s20, 0
      %p134 = por %p132, %p133
      %p135 = scmp.ne.s32.totalorder %s124, %s127
      %p136 = scmp.eq.s32.totalorder %s25, 1
      %p137 = por %p135, %p136
      %p138 = scmp.ne.s32.totalorder %s127, %s128
      %p139 = scmp.eq.s32.totalorder %s25, 0
      %p140 = por %p138, %p139
      %p141 = scmp.ne.s32.totalorder %s127, %s128
      %p142 = scmp.eq.s32.totalorder %s26, 1
      %p143 = por %p141, %p142
      %p145 = scmp.ne.s32.totalorder %s128, %s144
      %p146 = scmp.eq.s32.totalorder %s26, 0
      %p147 = por %p145, %p146
      %p148 = scmp.le.s32.totalorder 1, %s20
      %p149 = scmp.lt.s32.totalorder %s20, 3
      %p150 = pnand %p148, %p149
      %p151 = pneg %p150
      // Predicated region
      $region9: #{tpu_custom_call.1} parent=5 // pred_check
        _
      $region10: #{tpu_custom_call.1} parent=5 // pred_check_branch
        %153 = sbr.rel (%p150) target = $region12
      $region11: #{tpu_custom_call.1} parent=5 // pred_region
        %s154 = ssub.s32 %s20, 1
        // Predicated region
        $region13: #{tpu_custom_call.1} parent=11 // pred_check
          %p155 = pneg %p93
        $region14: #{tpu_custom_call.1} parent=11 // pred_check_branch
          %157 = sbr.rel (%p155) target = $region16
        $region15: #{tpu_custom_call.1} parent=11 // pred_region
          %s159 = ssub.s32 512, 512
          %160 = vsyncadd [#allocation6], %s159
          %s161 = sshll.u32 [#allocation7], 4
          %s162 = int_to_ptr.vmem [resolvable:$true] %s161
          %167 = dma.hbm_to_vmem [thread:$0]  %s2, 512, %s162, [#allocation6], 128, 128, 8
        $region16: #{tpu_custom_call.1} parent=11 // pred_fallthru
          _
        // Predicated region
        $region17: #{tpu_custom_call.1} parent=11 // pred_check
          %p168 = pneg %p114
        $region18: #{tpu_custom_call.1} parent=11 // pred_check_branch
          %170 = sbr.rel (%p168) target = $region20
        $region19: #{tpu_custom_call.1} parent=11 // pred_region
          %s172 = ssub.s32 512, 512
          %173 = vsyncadd [#allocation9], %s172
          %s174 = sshll.u32 [#allocation8], 4
          %s175 = int_to_ptr.vmem [resolvable:$true] %s174
          %180 = dma.hbm_to_vmem [thread:$0]  %s3, 512, %s175, [#allocation9], 128, 128, 8
        $region20: #{tpu_custom_call.1} parent=11 // pred_fallthru
          _
      $region12: #{tpu_custom_call.1} parent=5 // pred_fallthru
        _
      %p181 = scmp.lt.s32.totalorder %s20, 2
      // Predicated region
      $region21: #{tpu_custom_call.1} parent=5 // pred_check
        %p182 = pneg %p181
      $region22: #{tpu_custom_call.1} parent=5 // pred_check_branch
        %184 = sbr.rel (%p182) target = $region24
      $region23: #{tpu_custom_call.1} parent=5 // pred_region
        // Predicated region
        $region25: #{tpu_custom_call.1} parent=23 // pred_check
          %p185 = pneg %p40
        $region26: #{tpu_custom_call.1} parent=23 // pred_check_branch
          %187 = sbr.rel (%p185) target = $region28
        $region27: #{tpu_custom_call.1} parent=23 // pred_region
          %s188 = sand.u32 %s30, 1
          %s189 = scalar_lea.sflag [#allocation3], %s188
          %s190 = sand.u32 %s30, 1
          %s191 = smul.addr %s190, 8
          %s192 = scalar_lea.vmem [#allocation2], %s191
          %s194 = ssub.s32 128, 128
          %195 = vsyncadd %s189, %s194
          %s196 = smul.addr %s20, 128
          %s197 = scalar_lea.hbm %s0, %s196
          %s199 = sshll.u32 %s192, 4
          %s200 = int_to_ptr.vmem [resolvable:$true] %s199
          %202 = dma.hbm_to_vmem [thread:$0]  %s197, 128, %s200, %s189
        $region28: #{tpu_custom_call.1} parent=23 // pred_fallthru
          _
        // Predicated region
        $region29: #{tpu_custom_call.1} parent=23 // pred_check
          %p203 = pneg %p66
        $region30: #{tpu_custom_call.1} parent=23 // pred_check_branch
          %205 = sbr.rel (%p203) target = $region32
        $region31: #{tpu_custom_call.1} parent=23 // pred_region
          %s206 = sand.u32 %s20, 1
          %s207 = scalar_lea.sflag [#allocation6], %s206
          %s208 = sand.u32 %s56, 1
          %s209 = smul.addr %s208, 8
          %s210 = scalar_lea.vmem [#allocation5], %s209
          %s212 = ssub.s32 128, 128
          %213 = vsyncadd %s207, %s212
          %s214 = smul.addr %s20, 128
          %s215 = scalar_lea.hbm %s1, %s214
          %s217 = sshll.u32 %s210, 4
          %s218 = int_to_ptr.vmem [resolvable:$true] %s217
          %220 = dma.hbm_to_vmem [thread:$0]  %s215, 128, %s218, %s207
        $region32: #{tpu_custom_call.1} parent=23 // pred_fallthru
          _
      $region24: #{tpu_custom_call.1} parent=5 // pred_fallthru
        _
      %p221 = scmp.le.s32.totalorder 1, %s20
      %p222 = scmp.lt.s32.totalorder %s20, 3
      %p223 = pnand %p221, %p222
      %p224 = pneg %p223
      // Predicated region
      $region33: #{tpu_custom_call.1} parent=5 // pred_check
        _
      $region34: #{tpu_custom_call.1} parent=5 // pred_check_branch
        %226 = sbr.rel (%p223) target = $region36
      $region35: #{tpu_custom_call.1} parent=5 // pred_region
        %s227 = ssub.s32 %s20, 1
        %s228 = sand.u32 %s33, 1
        %s229 = scalar_lea.sflag [#allocation3], %s228
        %s230 = sand.u32 %s33, 1
        %s231 = smul.addr %s230, 8
        %s232 = scalar_lea.vmem [#allocation2], %s231
        // Predicated region
        $region37: #{tpu_custom_call.1} parent=35 // pred_check
          %p233 = pneg %p46
        $region38: #{tpu_custom_call.1} parent=35 // pred_check_branch
          %235 = sbr.rel (%p233) target = $region40
        $region39: #{tpu_custom_call.1} parent=35 // pred_region
          %236 = dma.done %s229, 128
        $region40: #{tpu_custom_call.1} parent=35 // pred_fallthru
          _
        %s237 = sand.u32 %s25, 1
        %s238 = scalar_lea.sflag [#allocation6], %s237
        %s239 = sand.u32 %s59, 1
        %s240 = smul.addr %s239, 8
        %s241 = scalar_lea.vmem [#allocation5], %s240
        // Predicated region
        $region41: #{tpu_custom_call.1} parent=35 // pred_check
          %p242 = pneg %p72
        $region42: #{tpu_custom_call.1} parent=35 // pred_check_branch
          %244 = sbr.rel (%p242) target = $region44
        $region43: #{tpu_custom_call.1} parent=35 // pred_region
          %245 = dma.done %s238, 128
        $region44: #{tpu_custom_call.1} parent=35 // pred_fallthru
          _
        // Predicated region
        $region45: #{tpu_custom_call.1} parent=35 // pred_check
          %p246 = pneg %p93
        $region46: #{tpu_custom_call.1} parent=35 // pred_check_branch
          %248 = sbr.rel (%p246) target = $region48
        $region47: #{tpu_custom_call.1} parent=35 // pred_region
          %249 = dma.done [#allocation6], 512
        $region48: #{tpu_custom_call.1} parent=35 // pred_fallthru
          _
        // Predicated region
        $region49: #{tpu_custom_call.1} parent=35 // pred_check
          %p250 = pneg %p114
        $region50: #{tpu_custom_call.1} parent=35 // pred_check_branch
          %252 = sbr.rel (%p250) target = $region52
        $region51: #{tpu_custom_call.1} parent=35 // pred_region
          %253 = dma.done [#allocation9], 512
        $region52: #{tpu_custom_call.1} parent=35 // pred_fallthru
          _
        %s254 = sand.u32 %s33, 1
        %s255 = scalar_lea.sflag [#allocation3], %s254
        %s256 = sand.u32 %s33, 1
        %s257 = smul.addr %s256, 8
        %s258 = scalar_lea.vmem [#allocation2], %s257
        %p259 = pneg %p46
        %p260 = pneg %p43
        %s261 = sand.u32 %s25, 1
        %s262 = scalar_lea.sflag [#allocation6], %s261
        %s263 = sand.u32 %s59, 1
        %s264 = smul.addr %s263, 8
        %s265 = scalar_lea.vmem [#allocation5], %s264
        %p266 = pneg %p72
        %p267 = pneg %p69
        %p268 = pneg %p93
        %p269 = pneg %p90
        %p270 = pneg %p114
        %p271 = pneg %p111
        %p272 = pneg %p140
        %p273 = pneg %p137
        %s274 = sand.u32 %s127, 1
        %s275 = scalar_lea.sflag [#allocation4], %s274
        %s276 = sand.u32 %s127, 1
        %s277 = smul.addr %s276, 8
        %s278 = scalar_lea.vmem [#allocation10], %s277
        %v279 = vld [vmem:[%s232] sm:$0xff]
        %v280 = vld [vmem:[%s241] sm:$0xff]
        %v281 = vld [vmem:[#allocation7] sm:$0xff]
        %v282 = vld [vmem:[#allocation7 + $0x8] sm:$0xff]
        %v283 = vld [vmem:[#allocation7 + $0x10] sm:$0xff]
        %v284 = vld [vmem:[#allocation7 + $0x18] sm:$0xff]
        %v285 = vld [vmem:[#allocation8] sm:$0xff]
        %v286 = vld [vmem:[#allocation8 + $0x8] sm:$0xff]
        %v287 = vld [vmem:[#allocation8 + $0x10] sm:$0xff]
        %v288 = vld [vmem:[#allocation8 + $0x18] sm:$0xff]
        %vm289 = vcmask 261120
        %v291 = vsel %vm289, %v280, 0
        %293 = vmatprep.subr.mxu0 0.0
        %294 = vmatpush1.msra.mxu0 %v285
        %295 = vmatprep.subr.mxu0 0.0
        %296 = vmatpush1.msra.mxu0 %v286
        %297 = vmatprep.subr.mxu0 0.0
        %298 = vmatpush1.msra.mxu0 %v287
        %299 = vmatprep.subr.mxu0 0.0
        %300 = vmatpush1.msra.mxu0 %v288
        %301 = vmatprep.subr.mxu0 0.0
        %302 = vmatpush1.msra.mxu0 0.0
        %303 = vmatprep.subr.mxu0 0.0
        %304 = vmatpush1.msra.mxu0 0.0
        %305 = vmatprep.subr.mxu0 0.0
        %306 = vmatpush1.msra.mxu0 0.0
        %307 = vmatprep.subr.mxu0 0.0
        %308 = vmatpush1.msra.mxu0 0.0
        %309 = vmatprep.subr.mxu0 0.0
        %310 = vmatpush1.msra.mxu0 0.0
        %311 = vmatprep.subr.mxu0 0.0
        %312 = vmatpush1.msra.mxu0 0.0
        %313 = vmatprep.subr.mxu0 0.0
        %314 = vmatpush1.msra.mxu0 0.0
        %315 = vmatprep.subr.mxu0 0.0
        %316 = vmatpush1.msra.mxu0 0.0
        %317 = vmatprep.subr.mxu0 0.0
        %318 = vmatpush1.msra.mxu0 0.0
        %319 = vmatprep.subr.mxu0 0.0
        %320 = vmatpush1.msra.mxu0 0.0
        %321 = vmatprep.subr.mxu0 0.0
        %322 = vmatpush1.msra.mxu0 0.0
        %323 = vmatprep.subr.mxu0 0.0
        %324 = vmatpush1.msra.mxu0 0.0
        %325 = vmatprep.subr.mxu0 0.0
        %326 = vmatpush1.msra.mxu0 0.0
        %327 = vmatprep.subr.mxu0 0.0
        %328 = vmatpush1.msra.mxu0 0.0
        %329 = vmatprep.subr.mxu0 0.0
        %330 = vmatpush1.msra.mxu0 0.0
        %331 = vmatprep.subr.mxu0 0.0
        %332 = vmatpush1.msra.mxu0 0.0
        %333 = vmatprep.subr.mxu0 0.0
        %334 = vmatpush1.msra.mxu0 0.0
        %335 = vmatprep.subr.mxu0 0.0
        %336 = vmatpush1.msra.mxu0 0.0
        %337 = vmatprep.subr.mxu0 0.0
        %338 = vmatpush1.msra.mxu0 0.0
        %339 = vmatprep.subr.mxu0 0.0
        %340 = vmatpush1.msra.mxu0 0.0
        %341 = vmatprep.subr.mxu0 0.0
        %342 = vmatpush1.msra.mxu0 0.0
        %343 = vmatprep.subr.mxu0 0.0
        %344 = vmatpush1.msra.mxu0 0.0
        %345 = vmatprep.subr.mxu0 0.0
        %346 = vmatpush1.msra.mxu0 0.0
        %347 = vmatprep.subr.mxu0 0.0
        %348 = vmatpush1.msra.mxu0 0.0
        %349 = vmatprep.subr.mxu0 0.0
        %350 = vmatpush1.msra.mxu0 0.0
        %351 = vmatprep.subr.mxu0 0.0
        %352 = vmatpush1.msra.mxu0 0.0
        %353 = vmatprep.subr.mxu0 0.0
        %354 = vmatpush1.msra.mxu0 0.0
        %355 = vmatprep.subr.mxu0 0.0
        %356 = vmatpush1.msra.mxu0 0.0
        %357 = vmatprep.mubr.f32.mxu0 0.0
        %358 = vmatmul.mubr.f32.gmra.mrb[0].mxu0 %v291
        %v359 = vpop.f32.mrb[0].mxu0
        %v360 = vadd.f32 0.0, %v359
        %v361 = vpop.f32.mrb[0].mxu0
        %362 = vdwg.mxu0
        %v364 = vsel %vm289, %v279, 0
        %366 = vmatprep.subr.mxu0 0.0
        %367 = vmatpush1.msra.mxu0 %v281
        %368 = vmatprep.subr.mxu0 0.0
        %369 = vmatpush1.msra.mxu0 %v282
        %370 = vmatprep.subr.mxu0 0.0
        %371 = vmatpush1.msra.mxu0 %v283
        %372 = vmatprep.subr.mxu0 0.0
        %373 = vmatpush1.msra.mxu0 %v284
        %374 = vmatprep.subr.mxu0 0.0
        %375 = vmatpush1.msra.mxu0 0.0
        %376 = vmatprep.subr.mxu0 0.0
        %377 = vmatpush1.msra.mxu0 0.0
        %378 = vmatprep.subr.mxu0 0.0
        %379 = vmatpush1.msra.mxu0 0.0
        %380 = vmatprep.subr.mxu0 0.0
        %381 = vmatpush1.msra.mxu0 0.0
        %382 = vmatprep.subr.mxu0 0.0
        %383 = vmatpush1.msra.mxu0 0.0
        %384 = vmatprep.subr.mxu0 0.0
        %385 = vmatpush1.msra.mxu0 0.0
        %386 = vmatprep.subr.mxu0 0.0
        %387 = vmatpush1.msra.mxu0 0.0
        %388 = vmatprep.subr.mxu0 0.0
        %389 = vmatpush1.msra.mxu0 0.0
        %390 = vmatprep.subr.mxu0 0.0
        %391 = vmatpush1.msra.mxu0 0.0
        %392 = vmatprep.subr.mxu0 0.0
        %393 = vmatpush1.msra.mxu0 0.0
        %394 = vmatprep.subr.mxu0 0.0
        %395 = vmatpush1.msra.mxu0 0.0
        %396 = vmatprep.subr.mxu0 0.0
        %397 = vmatpush1.msra.mxu0 0.0
        %398 = vmatprep.subr.mxu0 0.0
        %399 = vmatpush1.msra.mxu0 0.0
        %400 = vmatprep.subr.mxu0 0.0
        %401 = vmatpush1.msra.mxu0 0.0
        %402 = vmatprep.subr.mxu0 0.0
        %403 = vmatpush1.msra.mxu0 0.0
        %404 = vmatprep.subr.mxu0 0.0
        %405 = vmatpush1.msra.mxu0 0.0
        %406 = vmatprep.subr.mxu0 0.0
        %407 = vmatpush1.msra.mxu0 0.0
        %408 = vmatprep.subr.mxu0 0.0
        %409 = vmatpush1.msra.mxu0 0.0
        %410 = vmatprep.subr.mxu0 0.0
        %411 = vmatpush1.msra.mxu0 0.0
        %412 = vmatprep.subr.mxu0 0.0
        %413 = vmatpush1.msra.mxu0 0.0
        %414 = vmatprep.subr.mxu0 0.0
        %415 = vmatpush1.msra.mxu0 0.0
        %416 = vmatprep.subr.mxu0 0.0
        %417 = vmatpush1.msra.mxu0 0.0
        %418 = vmatprep.subr.mxu0 0.0
        %419 = vmatpush1.msra.mxu0 0.0
        %420 = vmatprep.subr.mxu0 0.0
        %421 = vmatpush1.msra.mxu0 0.0
        %422 = vmatprep.subr.mxu0 0.0
        %423 = vmatpush1.msra.mxu0 0.0
        %424 = vmatprep.subr.mxu0 0.0
        %425 = vmatpush1.msra.mxu0 0.0
        %426 = vmatprep.subr.mxu0 0.0
        %427 = vmatpush1.msra.mxu0 0.0
        %428 = vmatprep.subr.mxu0 0.0
        %429 = vmatpush1.msra.mxu0 0.0
        %430 = vmatprep.mubr.f32.mxu0 0.0
        %431 = vmatmul.mubr.f32.gmra.mrb[0].mxu0 %v364
        %v432 = vpop.f32.mrb[0].mxu0
        %v433 = vadd.f32 %v360, %v432
        %v434 = vpop.f32.mrb[0].mxu0
        %435 = vdwg.mxu0
        %v436 = vxor.u32 %v433, 2147483648
        %v437 = vmul.f32 %v436, 1.442695
        %v438 = vpow.pop %v437
        %v439 = vadd.f32 %v438, 1.0
        %v440 = vrcp.pop %v439
        %v441 = vmul.f32 1.0, %v440
        %v442 = vsub.f32 %v279, %v280
        %v443 = vmul.f32 %v441, %v442
        %v444 = vadd.f32 %v280, %v443
        %445 = vst.msk [vmem:[%s278] sm:$0xff] %vm289, %v444
        %s446 = sand.u32 %s127, 1
        %s447 = scalar_lea.sflag [#allocation4], %s446
        %s448 = sand.u32 %s127, 1
        %s449 = smul.addr %s448, 8
        %s450 = scalar_lea.vmem [#allocation10], %s449
        // Predicated region
        $region53: #{tpu_custom_call.1} parent=35 // pred_check
          %p451 = pneg %p137
        $region54: #{tpu_custom_call.1} parent=35 // pred_check_branch
          %453 = sbr.rel (%p451) target = $region56
        $region55: #{tpu_custom_call.1} parent=35 // pred_region
          %s455 = ssub.s32 128, 128
          %456 = vsyncadd %s447, %s455
          %s457 = smul.addr %s25, 128
          %s458 = scalar_lea.hbm %s4, %s457
          %s460 = sshll.u32 %s450, 4
          %s461 = int_to_ptr.vmem [resolvable:$true] %s460
          %463 = dma.vmem_to_hbm [thread:$0]  %s461, 128, %s458, %s447
        $region56: #{tpu_custom_call.1} parent=35 // pred_fallthru
          _
      $region36: #{tpu_custom_call.1} parent=5 // pred_fallthru
        _
      %p464 = scmp.le.s32.totalorder 2, %s20
      // Predicated region
      $region57: #{tpu_custom_call.1} parent=5 // pred_check
        %p465 = pneg %p464
      $region58: #{tpu_custom_call.1} parent=5 // pred_check_branch
        %467 = sbr.rel (%p465) target = $region60
      $region59: #{tpu_custom_call.1} parent=5 // pred_region
        %s468 = ssub.s32 %s20, 2
        // Predicated region
        $region61: #{tpu_custom_call.1} parent=59 // pred_check
          %p469 = pneg %p143
        $region62: #{tpu_custom_call.1} parent=59 // pred_check_branch
          %471 = sbr.rel (%p469) target = $region64
        $region63: #{tpu_custom_call.1} parent=59 // pred_region
          %s472 = sand.u32 %s128, 1
          %s473 = scalar_lea.sflag [#allocation4], %s472
          %s474 = sand.u32 %s128, 1
          %s475 = smul.addr %s474, 8
          %s476 = scalar_lea.vmem [#allocation10], %s475
          %477 = dma.done %s473, 128
        $region64: #{tpu_custom_call.1} parent=59 // pred_fallthru
          _
      $region60: #{tpu_custom_call.1} parent=5 // pred_fallthru
        _
    $region6: #{tpu_custom_call.1} parent=1 // loop_footer
      %s24 = sadd.s32 1, %s20
    $region7: #{tpu_custom_call.1} parent=1 // loop_footer_branch
      %19 = sbr.rel target = $region3
    $region8: #{tpu_custom_call.1} parent=1 // loop_exit
      _
    %478 = vsyncpa [#allocation3], 1
    %s479 = scalar_lea.sflag [#allocation3], 1
    %480 = vsyncpa %s479, 1
    %481 = vsyncpa [#allocation6], 1
    %s482 = scalar_lea.sflag [#allocation6], 1
    %483 = vsyncpa %s482, 1
    %484 = vsyncpa [#allocation9], 1
    %485 = vsyncpa [#allocation4], 1
    %s486 = scalar_lea.sflag [#allocation4], 1
    %487 = vsyncpa %s486, 1

// kernel: tpu_custom_call.1
$region0: #{tpu_custom_call.1}
  #allocation0 [shape = 'u32[]', space=smem, size = 0x4, offset = 0x4, fixed_abs, tag = 'smem constant byte address 0x4 - core index']
  #allocation1 [shape = 'u32[144,128]{1,0:T(1,128)}', space=vmem, size = 0x12000, scoped, tag = 'internal scratch']
  %s0 = inlined_call_operand.hbm [shape: f32[16,32], index: 0, kind: input, shape index: {}]
  %s1 = inlined_call_operand.hbm [shape: f32[16,32], index: 1, kind: input, shape index: {}]
  %s2 = inlined_call_operand.hbm [shape: f32[32,32], index: 2, kind: input, shape index: {}]
  %s3 = inlined_call_operand.hbm [shape: f32[32,32], index: 3, kind: input, shape index: {}]
  %s4 = inlined_call_operand.hbm [shape: f32[16,32], index: 4, kind: output, shape index: {}]
  %s5 = sld [smem:[#allocation0]]
  $region65: #{tpu_custom_call.1} parent=0
    _
  %s7 = ssub.s32 1, %s5
  %s8 = scalar_select 0, %s7, %s5
  $region1: #{tpu_custom_call.1} parent=0
    #allocation2 [shape = 'u8[8192]{0}', space=vmem, size = 0x2000, scoped, tag = 'input window, operand 0']
    #allocation3 [shape = 's32[2]{0}', space=sflag, size = 0x8, scoped, tag = 'scoped memory for tpu_custom_call.1']
    #allocation4 [shape = 's32[2]{0}', space=sflag, size = 0x8, scoped, tag = 'scoped memory for tpu_custom_call.1']
    #allocation5 [shape = 'u8[8192]{0}', space=vmem, size = 0x2000, scoped, tag = 'input window, operand 1']
    #allocation6 [shape = 's32[2]{0}', space=sflag, size = 0x8, scoped, tag = 'scoped memory for tpu_custom_call.1']
    #allocation7 [shape = 'u8[16384]{0}', space=vmem, size = 0x4000, scoped, tag = 'input window, operand 2, single buffered']
    #allocation8 [shape = 'u8[16384]{0}', space=vmem, size = 0x4000, scoped, tag = 'input window, operand 3, single buffered']
    #allocation9 [shape = 's32[1]{0}', space=sflag, size = 0x4, scoped, tag = 'scoped memory for tpu_custom_call.1']
    #allocation10 [shape = 'u8[8192]{0}', space=vmem, size = 0x2000, scoped, tag = 'output window, operand 0']
    %9 = vsyncpa [#allocation3], 0
    %s10 = scalar_lea.sflag [#allocation3], 1
    %11 = vsyncpa %s10, 0
    %12 = vsyncpa [#allocation6], 0
    %s13 = scalar_lea.sflag [#allocation6], 1
    %14 = vsyncpa %s13, 0
    %15 = vsyncpa [#allocation9], 0
    %16 = vsyncpa [#allocation4], 0
    %s17 = scalar_lea.sflag [#allocation4], 1
    %18 = vsyncpa %s17, 0
    loop: start=0, step=1, limit=4
    $region2: #{tpu_custom_call.1} parent=1 // loop_pre_header
      _
    $region3: #{tpu_custom_call.1} parent=1 // loop_header
      %s20 = sphi 0, %s24
      %p21 = scmp.ge.s32.totalorder %s20, 4
      %s30 = sphi 0, %s32
      %s33 = sphi 0, %s30
      %s34 = sphi 0, %s33
      %s50 = sphi 0, %s34
      %s56 = sphi 0, %s58
      %s59 = sphi 0, %s56
      %s60 = sphi 0, %s59
      %s76 = sphi 0, %s60
      %s80 = sphi 0, %s80
      %s82 = sphi 0, %s80
      %s83 = sphi 0, %s82
      %s97 = sphi 0, %s83
      %s101 = sphi 0, %s101
      %s103 = sphi 0, %s101
      %s104 = sphi 0, %s103
      %s118 = sphi 0, %s104
      %s124 = sphi 0, %s126
      %s127 = sphi 0, %s124
      %s128 = sphi 0, %s127
      %s144 = sphi 0, %s128
    $region4: #{tpu_custom_call.1} parent=1 // loop_header_branch
      %23 = sbr.rel (%p21) target = $region8
    $region5: #{tpu_custom_call.1} parent=1 // loop_body
      %s25 = ssub.s32 %s20, 1
      %s26 = ssub.s32 %s20, 2
      %s27 = sadd.s32 %s20, 1
      %s28 = ssub.s32 %s20, %s27
      %p29 = scmp.eq.s32.totalorder %s28, 0
      %s31 = sadd.s32 %s30, 1
      %s32 = scalar_select %p29, %s30, %s31
      %p35 = pneg %p29
      %p36 = scmp.eq.s32.totalorder %s20, 1
      %p37 = por %p35, %p36
      %p38 = scmp.ne.s32.totalorder %s30, %s33
      %p39 = scmp.eq.s32.totalorder %s20, 0
      %p40 = por %p38, %p39
      %p41 = scmp.ne.s32.totalorder %s30, %s33
      %p42 = scmp.eq.s32.totalorder %s25, 1
      %p43 = por %p41, %p42
      %p44 = scmp.ne.s32.totalorder %s33, %s34
      %p45 = scmp.eq.s32.totalorder %s25, 0
      %p46 = por %p44, %p45
      %p47 = scmp.ne.s32.totalorder %s33, %s34
      %p48 = scmp.eq.s32.totalorder %s26, 1
      %p49 = por %p47, %p48
      %p51 = scmp.ne.s32.totalorder %s34, %s50
      %p52 = scmp.eq.s32.totalorder %s26, 0
      %p53 = por %p51, %p52
      %s54 = ssub.s32 %s20, %s27
      %p55 = scmp.eq.s32.totalorder %s54, 0
      %s57 = sadd.s32 %s56, 1
      %s58 = scalar_select %p55, %s56, %s57
      %p61 = pneg %p55
      %p62 = scmp.eq.s32.totalorder %s20, 1
      %p63 = por %p61, %p62
      %p64 = scmp.ne.s32.totalorder %s56, %s59
      %p65 = scmp.eq.s32.totalorder %s20, 0
      %p66 = por %p64, %p65
      %p67 = scmp.ne.s32.totalorder %s56, %s59
      %p68 = scmp.eq.s32.totalorder %s25, 1
      %p69 = por %p67, %p68
      %p70 = scmp.ne.s32.totalorder %s59, %s60
      %p71 = scmp.eq.s32.totalorder %s25, 0
      %p72 = por %p70, %p71
      %p73 = scmp.ne.s32.totalorder %s59, %s60
      %p74 = scmp.eq.s32.totalorder %s26, 1
      %p75 = por %p73, %p74
      %p77 = scmp.ne.s32.totalorder %s60, %s76
      %p78 = scmp.eq.s32.totalorder %s26, 0
      %p79 = por %p77, %p78
      %s81 = sadd.s32 %s80, 1
      %p84 = scmp.eq.s32.totalorder %s20, 1
      %p85 = scmp.ne.s32.totalorder %s80, %s82
      %p86 = scmp.eq.s32.totalorder %s20, 0
      %p87 = por %p85, %p86
      %p88 = scmp.ne.s32.totalorder %s80, %s82
      %p89 = scmp.eq.s32.totalorder %s25, 1
      %p90 = por %p88, %p89
      %p91 = scmp.ne.s32.totalorder %s82, %s83
      %p92 = scmp.eq.s32.totalorder %s25, 0
      %p93 = por %p91, %p92
      %p94 = scmp.ne.s32.totalorder %s82, %s83
      %p95 = scmp.eq.s32.totalorder %s26, 1
      %p96 = por %p94, %p95
      %p98 = scmp.ne.s32.totalorder %s83, %s97
      %p99 = scmp.eq.s32.totalorder %s26, 0
      %p100 = por %p98, %p99
      %s102 = sadd.s32 %s101, 1
      %p105 = scmp.eq.s32.totalorder %s20, 1
      %p106 = scmp.ne.s32.totalorder %s101, %s103
      %p107 = scmp.eq.s32.totalorder %s20, 0
      %p108 = por %p106, %p107
      %p109 = scmp.ne.s32.totalorder %s101, %s103
      %p110 = scmp.eq.s32.totalorder %s25, 1
      %p111 = por %p109, %p110
      %p112 = scmp.ne.s32.totalorder %s103, %s104
      %p113 = scmp.eq.s32.totalorder %s25, 0
      %p114 = por %p112, %p113
      %p115 = scmp.ne.s32.totalorder %s103, %s104
      %p116 = scmp.eq.s32.totalorder %s26, 1
      %p117 = por %p115, %p116
      %p119 = scmp.ne.s32.totalorder %s104, %s118
      %p120 = scmp.eq.s32.totalorder %s26, 0
      %p121 = por %p119, %p120
      %s122 = ssub.s32 %s20, %s27
      %p123 = scmp.eq.s32.totalorder %s122, 0
      %s125 = sadd.s32 %s124, 1
      %s126 = scalar_select %p123, %s124, %s125
      %p129 = pneg %p123
      %p130 = scmp.eq.s32.totalorder %s20, 1
      %p131 = por %p129, %p130
      %p132 = scmp.ne.s32.totalorder %s124, %s127
      %p133 = scmp.eq.s32.totalorder %s20, 0
      %p134 = por %p132, %p133
      %p135 = scmp.ne.s32.totalorder %s124, %s127
      %p136 = scmp.eq.s32.totalorder %s25, 1
      %p137 = por %p135, %p136
      %p138 = scmp.ne.s32.totalorder %s127, %s128
      %p139 = scmp.eq.s32.totalorder %s25, 0
      %p140 = por %p138, %p139
      %p141 = scmp.ne.s32.totalorder %s127, %s128
      %p142 = scmp.eq.s32.totalorder %s26, 1
      %p143 = por %p141, %p142
      %p145 = scmp.ne.s32.totalorder %s128, %s144
      %p146 = scmp.eq.s32.totalorder %s26, 0
      %p147 = por %p145, %p146
      %p148 = scmp.le.s32.totalorder 1, %s20
      %p149 = scmp.lt.s32.totalorder %s20, 3
      %p150 = pnand %p148, %p149
      %p151 = pneg %p150
      // Predicated region
      $region9: #{tpu_custom_call.1} parent=5 // pred_check
        _
      $region10: #{tpu_custom_call.1} parent=5 // pred_check_branch
        %153 = sbr.rel (%p150) target = $region12
      $region11: #{tpu_custom_call.1} parent=5 // pred_region
        %s154 = ssub.s32 %s20, 1
        // Predicated region
        $region13: #{tpu_custom_call.1} parent=11 // pred_check
          %p155 = pneg %p93
        $region14: #{tpu_custom_call.1} parent=11 // pred_check_branch
          %157 = sbr.rel (%p155) target = $region16
        $region15: #{tpu_custom_call.1} parent=11 // pred_region
          %s159 = ssub.s32 512, 512
          %160 = vsyncadd [#allocation6], %s159
          %s161 = sshll.u32 [#allocation7], 4
          %s162 = int_to_ptr.vmem [resolvable:$true] %s161
          %167 = dma.hbm_to_vmem [thread:$0]  %s2, 512, %s162, [#allocation6], 128, 128, 8
        $region16: #{tpu_custom_call.1} parent=11 // pred_fallthru
          _
        // Predicated region
        $region17: #{tpu_custom_call.1} parent=11 // pred_check
          %p168 = pneg %p114
        $region18: #{tpu_custom_call.1} parent=11 // pred_check_branch
          %170 = sbr.rel (%p168) target = $region20
        $region19: #{tpu_custom_call.1} parent=11 // pred_region
          %s172 = ssub.s32 512, 512
          %173 = vsyncadd [#allocation9], %s172
          %s174 = sshll.u32 [#allocation8], 4
          %s175 = int_to_ptr.vmem [resolvable:$true] %s174
          %180 = dma.hbm_to_vmem [thread:$0]  %s3, 512, %s175, [#allocation9], 128, 128, 8
        $region20: #{tpu_custom_call.1} parent=11 // pred_fallthru
          _
      $region12: #{tpu_custom_call.1} parent=5 // pred_fallthru
        _
      %p181 = scmp.lt.s32.totalorder %s20, 2
      // Predicated region
      $region21: #{tpu_custom_call.1} parent=5 // pred_check
        %p182 = pneg %p181
      $region22: #{tpu_custom_call.1} parent=5 // pred_check_branch
        %184 = sbr.rel (%p182) target = $region24
      $region23: #{tpu_custom_call.1} parent=5 // pred_region
        // Predicated region
        $region25: #{tpu_custom_call.1} parent=23 // pred_check
          %p185 = pneg %p40
        $region26: #{tpu_custom_call.1} parent=23 // pred_check_branch
          %187 = sbr.rel (%p185) target = $region28
        $region27: #{tpu_custom_call.1} parent=23 // pred_region
          %s188 = sand.u32 %s30, 1
          %s189 = scalar_lea.sflag [#allocation3], %s188
          %s190 = sand.u32 %s30, 1
          %s191 = smul.addr %s190, 8
          %s192 = scalar_lea.vmem [#allocation2], %s191
          %s194 = ssub.s32 128, 128
          %195 = vsyncadd %s189, %s194
          %s196 = smul.addr %s20, 128
          %s197 = scalar_lea.hbm %s0, %s196
          %s199 = sshll.u32 %s192, 4
          %s200 = int_to_ptr.vmem [resolvable:$true] %s199
          %202 = dma.hbm_to_vmem [thread:$0]  %s197, 128, %s200, %s189
        $region28: #{tpu_custom_call.1} parent=23 // pred_fallthru
          _
        // Predicated region
        $region29: #{tpu_custom_call.1} parent=23 // pred_check
          %p203 = pneg %p66
        $region30: #{tpu_custom_call.1} parent=23 // pred_check_branch
          %205 = sbr.rel (%p203) target = $region32
        $region31: #{tpu_custom_call.1} parent=23 // pred_region
          %s206 = sand.u32 %s20, 1
          %s207 = scalar_lea.sflag [#allocation6], %s206
          %s208 = sand.u32 %s56, 1
          %s209 = smul.addr %s208, 8
          %s210 = scalar_lea.vmem [#allocation5], %s209
          %s212 = ssub.s32 128, 128
          %213 = vsyncadd %s207, %s212
          %s214 = smul.addr %s20, 128
          %s215 = scalar_lea.hbm %s1, %s214
          %s217 = sshll.u32 %s210, 4
          %s218 = int_to_ptr.vmem [resolvable:$true] %s217
          %220 = dma.hbm_to_vmem [thread:$0]  %s215, 128, %s218, %s207
        $region32: #{tpu_custom_call.1} parent=23 // pred_fallthru
          _
      $region24: #{tpu_custom_call.1} parent=5 // pred_fallthru
        _
      %p221 = scmp.le.s32.totalorder 1, %s20
      %p222 = scmp.lt.s32.totalorder %s20, 3
      %p223 = pnand %p221, %p222
      %p224 = pneg %p223
      // Predicated region
      $region33: #{tpu_custom_call.1} parent=5 // pred_check
        _
      $region34: #{tpu_custom_call.1} parent=5 // pred_check_branch
        %226 = sbr.rel (%p223) target = $region36
      $region35: #{tpu_custom_call.1} parent=5 // pred_region
        %s227 = ssub.s32 %s20, 1
        %s228 = sand.u32 %s33, 1
        %s229 = scalar_lea.sflag [#allocation3], %s228
        %s230 = sand.u32 %s33, 1
        %s231 = smul.addr %s230, 8
        %s232 = scalar_lea.vmem [#allocation2], %s231
        // Predicated region
        $region37: #{tpu_custom_call.1} parent=35 // pred_check
          %p233 = pneg %p46
        $region38: #{tpu_custom_call.1} parent=35 // pred_check_branch
          %235 = sbr.rel (%p233) target = $region40
        $region39: #{tpu_custom_call.1} parent=35 // pred_region
          %236 = dma.done %s229, 128
        $region40: #{tpu_custom_call.1} parent=35 // pred_fallthru
          _
        %s237 = sand.u32 %s25, 1
        %s238 = scalar_lea.sflag [#allocation6], %s237
        %s239 = sand.u32 %s59, 1
        %s240 = smul.addr %s239, 8
        %s241 = scalar_lea.vmem [#allocation5], %s240
        // Predicated region
        $region41: #{tpu_custom_call.1} parent=35 // pred_check
          %p242 = pneg %p72
        $region42: #{tpu_custom_call.1} parent=35 // pred_check_branch
          %244 = sbr.rel (%p242) target = $region44
        $region43: #{tpu_custom_call.1} parent=35 // pred_region
          %245 = dma.done %s238, 128
        $region44: #{tpu_custom_call.1} parent=35 // pred_fallthru
          _
        // Predicated region
        $region45: #{tpu_custom_call.1} parent=35 // pred_check
          %p246 = pneg %p93
        $region46: #{tpu_custom_call.1} parent=35 // pred_check_branch
          %248 = sbr.rel (%p246) target = $region48
        $region47: #{tpu_custom_call.1} parent=35 // pred_region
          %249 = dma.done [#allocation6], 512
        $region48: #{tpu_custom_call.1} parent=35 // pred_fallthru
          _
        // Predicated region
        $region49: #{tpu_custom_call.1} parent=35 // pred_check
          %p250 = pneg %p114
        $region50: #{tpu_custom_call.1} parent=35 // pred_check_branch
          %252 = sbr.rel (%p250) target = $region52
        $region51: #{tpu_custom_call.1} parent=35 // pred_region
          %253 = dma.done [#allocation9], 512
        $region52: #{tpu_custom_call.1} parent=35 // pred_fallthru
          _
        %s254 = sand.u32 %s33, 1
        %s255 = scalar_lea.sflag [#allocation3], %s254
        %s256 = sand.u32 %s33, 1
        %s257 = smul.addr %s256, 8
        %s258 = scalar_lea.vmem [#allocation2], %s257
        %p259 = pneg %p46
        %p260 = pneg %p43
        %s261 = sand.u32 %s25, 1
        %s262 = scalar_lea.sflag [#allocation6], %s261
        %s263 = sand.u32 %s59, 1
        %s264 = smul.addr %s263, 8
        %s265 = scalar_lea.vmem [#allocation5], %s264
        %p266 = pneg %p72
        %p267 = pneg %p69
        %p268 = pneg %p93
        %p269 = pneg %p90
        %p270 = pneg %p114
        %p271 = pneg %p111
        %p272 = pneg %p140
        %p273 = pneg %p137
        %s274 = sand.u32 %s127, 1
        %s275 = scalar_lea.sflag [#allocation4], %s274
        %s276 = sand.u32 %s127, 1
        %s277 = smul.addr %s276, 8
        %s278 = scalar_lea.vmem [#allocation10], %s277
        %v279 = vld [vmem:[%s232] sm:$0xff]
        %v280 = vld [vmem:[%s241] sm:$0xff]
        %v281 = vld [vmem:[#allocation7] sm:$0xff]
        %v282 = vld [vmem:[#allocation7 + $0x8] sm:$0xff]
        %v283 = vld [vmem:[#allocation7 + $0x10] sm:$0xff]
        %v284 = vld [vmem:[#allocation7 + $0x18] sm:$0xff]
        %v285 = vld [vmem:[#allocation8] sm:$0xff]
        %v286 = vld [vmem:[#allocation8 + $0x8] sm:$0xff]
        %v287 = vld [vmem:[#allocation8 + $0x10] sm:$0xff]
        %v288 = vld [vmem:[#allocation8 + $0x18] sm:$0xff]
        %vm289 = vcmask 261120
        %v291 = vsel %vm289, %v280, 0
        %293 = vmatprep.subr.mxu0 0.0
        %294 = vmatpush1.msra.mxu0 %v285
        %295 = vmatprep.subr.mxu0 0.0
        %296 = vmatpush1.msra.mxu0 %v286
        %297 = vmatprep.subr.mxu0 0.0
        %298 = vmatpush1.msra.mxu0 %v287
        %299 = vmatprep.subr.mxu0 0.0
        %300 = vmatpush1.msra.mxu0 %v288
        %301 = vmatprep.subr.mxu0 0.0
        %302 = vmatpush1.msra.mxu0 0.0
        %303 = vmatprep.subr.mxu0 0.0
        %304 = vmatpush1.msra.mxu0 0.0
        %305 = vmatprep.subr.mxu0 0.0
        %306 = vmatpush1.msra.mxu0 0.0
        %307 = vmatprep.subr.mxu0 0.0
        %308 = vmatpush1.msra.mxu0 0.0
        %309 = vmatprep.subr.mxu0 0.0
        %310 = vmatpush1.msra.mxu0 0.0
        %311 = vmatprep.subr.mxu0 0.0
        %312 = vmatpush1.msra.mxu0 0.0
        %313 = vmatprep.subr.mxu0 0.0
        %314 = vmatpush1.msra.mxu0 0.0
        %315 = vmatprep.subr.mxu0 0.0
        %316 = vmatpush1.msra.mxu0 0.0
        %317 = vmatprep.subr.mxu0 0.0
        %318 = vmatpush1.msra.mxu0 0.0
        %319 = vmatprep.subr.mxu0 0.0
        %320 = vmatpush1.msra.mxu0 0.0
        %321 = vmatprep.subr.mxu0 0.0
        %322 = vmatpush1.msra.mxu0 0.0
        %323 = vmatprep.subr.mxu0 0.0
        %324 = vmatpush1.msra.mxu0 0.0
        %325 = vmatprep.subr.mxu0 0.0
        %326 = vmatpush1.msra.mxu0 0.0
        %327 = vmatprep.subr.mxu0 0.0
        %328 = vmatpush1.msra.mxu0 0.0
        %329 = vmatprep.subr.mxu0 0.0
        %330 = vmatpush1.msra.mxu0 0.0
        %331 = vmatprep.subr.mxu0 0.0
        %332 = vmatpush1.msra.mxu0 0.0
        %333 = vmatprep.subr.mxu0 0.0
        %334 = vmatpush1.msra.mxu0 0.0
        %335 = vmatprep.subr.mxu0 0.0
        %336 = vmatpush1.msra.mxu0 0.0
        %337 = vmatprep.subr.mxu0 0.0
        %338 = vmatpush1.msra.mxu0 0.0
        %339 = vmatprep.subr.mxu0 0.0
        %340 = vmatpush1.msra.mxu0 0.0
        %341 = vmatprep.subr.mxu0 0.0
        %342 = vmatpush1.msra.mxu0 0.0
        %343 = vmatprep.subr.mxu0 0.0
        %344 = vmatpush1.msra.mxu0 0.0
        %345 = vmatprep.subr.mxu0 0.0
        %346 = vmatpush1.msra.mxu0 0.0
        %347 = vmatprep.subr.mxu0 0.0
        %348 = vmatpush1.msra.mxu0 0.0
        %349 = vmatprep.subr.mxu0 0.0
        %350 = vmatpush1.msra.mxu0 0.0
        %351 = vmatprep.subr.mxu0 0.0
        %352 = vmatpush1.msra.mxu0 0.0
        %353 = vmatprep.subr.mxu0 0.0
        %354 = vmatpush1.msra.mxu0 0.0
        %355 = vmatprep.subr.mxu0 0.0
        %356 = vmatpush1.msra.mxu0 0.0
        %357 = vmatprep.mubr.f32.mxu0 0.0
        %358 = vmatmul.mubr.f32.gmra.mrb[0].mxu0 %v291
        %v359 = vpop.f32.mrb[0].mxu0
        %v360 = vadd.f32 0.0, %v359
        %v361 = vpop.f32.mrb[0].mxu0
        %362 = vdwg.mxu0
        %v364 = vsel %vm289, %v279, 0
        %366 = vmatprep.subr.mxu0 0.0
        %367 = vmatpush1.msra.mxu0 %v281
        %368 = vmatprep.subr.mxu0 0.0
        %369 = vmatpush1.msra.mxu0 %v282
        %370 = vmatprep.subr.mxu0 0.0
        %371 = vmatpush1.msra.mxu0 %v283
        %372 = vmatprep.subr.mxu0 0.0
        %373 = vmatpush1.msra.mxu0 %v284
        %374 = vmatprep.subr.mxu0 0.0
        %375 = vmatpush1.msra.mxu0 0.0
        %376 = vmatprep.subr.mxu0 0.0
        %377 = vmatpush1.msra.mxu0 0.0
        %378 = vmatprep.subr.mxu0 0.0
        %379 = vmatpush1.msra.mxu0 0.0
        %380 = vmatprep.subr.mxu0 0.0
        %381 = vmatpush1.msra.mxu0 0.0
        %382 = vmatprep.subr.mxu0 0.0
        %383 = vmatpush1.msra.mxu0 0.0
        %384 = vmatprep.subr.mxu0 0.0
        %385 = vmatpush1.msra.mxu0 0.0
        %386 = vmatprep.subr.mxu0 0.0
        %387 = vmatpush1.msra.mxu0 0.0
        %388 = vmatprep.subr.mxu0 0.0
        %389 = vmatpush1.msra.mxu0 0.0
        %390 = vmatprep.subr.mxu0 0.0
        %391 = vmatpush1.msra.mxu0 0.0
        %392 = vmatprep.subr.mxu0 0.0
        %393 = vmatpush1.msra.mxu0 0.0
        %394 = vmatprep.subr.mxu0 0.0
        %395 = vmatpush1.msra.mxu0 0.0
        %396 = vmatprep.subr.mxu0 0.0
        %397 = vmatpush1.msra.mxu0 0.0
        %398 = vmatprep.subr.mxu0 0.0
        %399 = vmatpush1.msra.mxu0 0.0
        %400 = vmatprep.subr.mxu0 0.0
        %401 = vmatpush1.msra.mxu0 0.0
        %402 = vmatprep.subr.mxu0 0.0
        %403 = vmatpush1.msra.mxu0 0.0
        %404 = vmatprep.subr.mxu0 0.0
        %405 = vmatpush1.msra.mxu0 0.0
        %406 = vmatprep.subr.mxu0 0.0
        %407 = vmatpush1.msra.mxu0 0.0
        %408 = vmatprep.subr.mxu0 0.0
        %409 = vmatpush1.msra.mxu0 0.0
        %410 = vmatprep.subr.mxu0 0.0
        %411 = vmatpush1.msra.mxu0 0.0
        %412 = vmatprep.subr.mxu0 0.0
        %413 = vmatpush1.msra.mxu0 0.0
        %414 = vmatprep.subr.mxu0 0.0
        %415 = vmatpush1.msra.mxu0 0.0
        %416 = vmatprep.subr.mxu0 0.0
        %417 = vmatpush1.msra.mxu0 0.0
        %418 = vmatprep.subr.mxu0 0.0
        %419 = vmatpush1.msra.mxu0 0.0
        %420 = vmatprep.subr.mxu0 0.0
        %421 = vmatpush1.msra.mxu0 0.0
        %422 = vmatprep.subr.mxu0 0.0
        %423 = vmatpush1.msra.mxu0 0.0
        %424 = vmatprep.subr.mxu0 0.0
        %425 = vmatpush1.msra.mxu0 0.0
        %426 = vmatprep.subr.mxu0 0.0
        %427 = vmatpush1.msra.mxu0 0.0
        %428 = vmatprep.subr.mxu0 0.0
        %429 = vmatpush1.msra.mxu0 0.0
        %430 = vmatprep.mubr.f32.mxu0 0.0
        %431 = vmatmul.mubr.f32.gmra.mrb[0].mxu0 %v364
        %v432 = vpop.f32.mrb[0].mxu0
        %v433 = vadd.f32 %v360, %v432
        %v434 = vpop.f32.mrb[0].mxu0
        %435 = vdwg.mxu0
        %v436 = vxor.u32 %v433, 2147483648
        %v437 = vmul.f32 %v436, 1.442695
        %v438 = vpow.pop %v437
        %v439 = vadd.f32 %v438, 1.0
        %v440 = vrcp.pop %v439
        %v441 = vmul.f32 1.0, %v440
        %v442 = vsub.f32 %v279, %v280
        %v443 = vmul.f32 %v441, %v442
        %v444 = vadd.f32 %v280, %v443
        %445 = vst.msk [vmem:[%s278] sm:$0xff] %vm289, %v444
        %s446 = sand.u32 %s127, 1
        %s447 = scalar_lea.sflag [#allocation4], %s446
        %s448 = sand.u32 %s127, 1
        %s449 = smul.addr %s448, 8
        %s450 = scalar_lea.vmem [#allocation10], %s449
        // Predicated region
        $region53: #{tpu_custom_call.1} parent=35 // pred_check
          %p451 = pneg %p137
        $region54: #{tpu_custom_call.1} parent=35 // pred_check_branch
          %453 = sbr.rel (%p451) target = $region56
        $region55: #{tpu_custom_call.1} parent=35 // pred_region
          %s455 = ssub.s32 128, 128
          %456 = vsyncadd %s447, %s455
          %s457 = smul.addr %s25, 128
          %s458 = scalar_lea.hbm %s4, %s457
          %s460 = sshll.u32 %s450, 4
          %s461 = int_to_ptr.vmem [resolvable:$true] %s460
          %463 = dma.vmem_to_hbm [thread:$0]  %s461, 128, %s458, %s447
        $region56: #{tpu_custom_call.1} parent=35 // pred_fallthru
          _
      $region36: #{tpu_custom_call.1} parent=5 // pred_fallthru
        _
      %p464 = scmp.le.s32.totalorder 2, %s20
      // Predicated region
      $region57: #{tpu_custom_call.1} parent=5 // pred_check
        %p465 = pneg %p464
      $region58: #{tpu_custom_call.1} parent=5 // pred_check_branch
        %467 = sbr.rel (%p465) target = $region60
      $region59: #{tpu_custom_call.1} parent=5 // pred_region
        %s468 = ssub.s32 %s20, 2
        // Predicated region
        $region61: #{tpu_custom_call.1} parent=59 // pred_check
          %p469 = pneg %p143
        $region62: #{tpu_custom_call.1} parent=59 // pred_check_branch
          %471 = sbr.rel (%p469) target = $region64
        $region63: #{tpu_custom_call.1} parent=59 // pred_region
          %s472 = sand.u32 %s128, 1
          %s473 = scalar_lea.sflag [#allocation4], %s472
          %s474 = sand.u32 %s128, 1
          %s475 = smul.addr %s474, 8
          %s476 = scalar_lea.vmem [#allocation10], %s475
          %477 = dma.done %s473, 128
        $region64: #{tpu_custom_call.1} parent=59 // pred_fallthru
          _
      $region60: #{tpu_custom_call.1} parent=5 // pred_fallthru
        _
    $region6: #{tpu_custom_call.1} parent=1 // loop_footer
      %s24 = sadd.s32 1, %s20
    $region7: #{tpu_custom_call.1} parent=1 // loop_footer_branch
      %19 = sbr.rel target = $region3
    $region8: #{tpu_custom_call.1} parent=1 // loop_exit
      _
    %478 = vsyncpa [#allocation3], 1
    %s479 = scalar_lea.sflag [#allocation3], 1
    %480 = vsyncpa %s479, 1
    %481 = vsyncpa [#allocation6], 1
    %s482 = scalar_lea.sflag [#allocation6], 1
    %483 = vsyncpa %s482, 1
    %484 = vsyncpa [#allocation9], 1
    %485 = vsyncpa [#allocation4], 1
    %s486 = scalar_lea.sflag [#allocation4], 1
    %487 = vsyncpa %s486, 1

</llo_original>
